<compile_context>
chip_gen: v5e
topology: v5e:2x2
jax: 0.10.0
libtpu: 0.0.40
codegen_flags: <defaults>
</compile_context>

<pallas_src>
import functools

import jax
import jax.numpy as jnp
from jax.experimental import pallas as pl
from jax.experimental.pallas import tpu as pltpu

_H1 = 128          # hidden 1 (already lane-aligned)
_H2P = 128         # hidden 2 padded 64 -> 128
_CP = 128          # classifier head padded num_classes -> 128


def _round_up(n, m):
    return ((n + m - 1) // m) * m


def _pad2(a, rows, cols):
    return jnp.pad(a, ((0, rows - a.shape[0]), (0, cols - a.shape[1])))


def _choose_batch_tile(batch, batch_tile):
    """Batch tile: multiple of 16, bounded by batch_tile, small padding waste, and
    >= 2 grid tiles whenever the batch is big enough (v7x dual-TensorCore split)."""
    n_tiles = pl.cdiv(batch, batch_tile)
    if n_tiles < 2 and batch >= 32:
        n_tiles = 2
    return _round_up(pl.cdiv(batch, n_tiles), 16)


def _resident_spec(shape):
    """Constant-index (grid-resident) block; single-buffered — weights never change."""
    try:
        return pl.BlockSpec(shape, lambda i: (0, 0), pipeline_mode=pl.Buffered(1))
    except TypeError:  # older BlockSpec without pipeline_mode kwarg
        return pl.BlockSpec(shape, lambda i: (0, 0))


def _mlp_kernel(x_ref, w1_ref, b1_ref, w2_ref, b2_ref, w3_ref, b3_ref, o_ref):
    # bf16 cast happens on-chip (VPU); x is streamed from HBM in its native f32 layout.
    x = x_ref[...].astype(jnp.bfloat16)
    # Layer 1: Linear(Dp, 128) + ReLU   (bf16 MXU inputs, f32 accumulation)
    h1 = jnp.dot(x, w1_ref[...], preferred_element_type=jnp.float32)
    h1 = jnp.maximum(h1 + b1_ref[...], 0.0)
    # Dropout(0.2): identity at inference time (eval mode).
    # Layer 2: Linear(128, 128p) + ReLU  (padded lanes are exactly zero)
    h2 = jnp.dot(h1.astype(jnp.bfloat16), w2_ref[...],
                 preferred_element_type=jnp.float32)
    h2 = jnp.maximum(h2 + b2_ref[...], 0.0)
    # Layer 3: Linear(128p, 128p) — lane-dense head; real classes live in [:, :C].
    out = jnp.dot(h2.astype(jnp.bfloat16), w3_ref[...],
                  preferred_element_type=jnp.float32)
    o_ref[...] = (out + b3_ref[...]).astype(o_ref.dtype)


def prepare_padded_params(params):
    """One-time pad + bf16 cast of weights (hoist this out of the per-call path)."""
    D = params["w1"].shape[0]
    Dp = _round_up(D, 128)
    return {
        "w1": _pad2(params["w1"], Dp, _H1).astype(jnp.bfloat16),
        "b1": _pad2(jnp.reshape(params["b1"], (1, -1)), 1, _H1).astype(jnp.float32),
        "w2": _pad2(params["w2"], _H1, _H2P).astype(jnp.bfloat16),
        "b2": _pad2(jnp.reshape(params["b2"], (1, -1)), 1, _H2P).astype(jnp.float32),
        "w3": _pad2(params["w3"], _H2P, _CP).astype(jnp.bfloat16),
        "b3": _pad2(jnp.reshape(params["b3"], (1, -1)), 1, _CP).astype(jnp.float32),
    }


def _forward_impl(x, prep, *, num_classes, batch_tile):
    w1p, b1p = prep["w1"], prep["b1"]
    w2p, b2p = prep["w2"], prep["b2"]
    w3p, b3p = prep["w3"], prep["b3"]
    B, D = x.shape
    Dp = w1p.shape[0]
    if Dp != _round_up(D, 128):
        raise ValueError(f"prepared params expect input_dim padded to {Dp}, got D={D}")

    TB = _choose_batch_tile(B, batch_tile)
    Bp = _round_up(B, TB)
    n_tiles = Bp // TB

    # Pad x only when strictly required (keep it f32; bf16 cast is done in-kernel).
    x_in = x if (Bp == B and Dp == D) else jnp.pad(x, ((0, Bp - B), (0, Dp - D)))

    # --- BlockSpecs: x/out tiled over batch, weights resident & single-buffered -------
    x_spec = pl.BlockSpec((TB, Dp), lambda i: (i, 0))
    o_spec = pl.BlockSpec((TB, _CP), lambda i: (i, 0))

    # --- VMEM budget: double-buffered x/out tiles + single-buffered resident weights --
    weight_bytes = 2 * (Dp * _H1 + _H1 * _H2P + _H2P * _CP) + 4 * (_H1 + _H2P + _CP)
    tile_bytes = 2 * TB * Dp * 4 + 2 * TB * _CP * 4
    try:
        vmem_cap = int(pltpu.get_tpu_info().vmem_capacity_bytes)
    except Exception:  # conservative fallback (v7x-sized)
        vmem_cap = 64 << 20
    vmem_limit = int(min(max(int(1.5 * (weight_bytes + tile_bytes)), 16 << 20),
                         vmem_cap // 2))

    flops = 2 * Bp * (Dp * _H1 + _H1 * _H2P + _H2P * _CP)
    bytes_accessed = Bp * Dp * 4 + weight_bytes + Bp * _CP * 4

    out_padded = pl.pallas_call(
        _mlp_kernel,
        out_shape=jax.ShapeDtypeStruct((Bp, _CP), jnp.float32),
        grid=(n_tiles,),
        in_specs=[
            x_spec,
            _resident_spec(w1p.shape), _resident_spec(b1p.shape),
            _resident_spec(w2p.shape), _resident_spec(b2p.shape),
            _resident_spec(w3p.shape), _resident_spec(b3p.shape),
        ],
        out_specs=o_spec,
        compiler_params=pltpu.CompilerParams(
            dimension_semantics=("parallel",),
            vmem_limit_bytes=vmem_limit,
        ),
        cost_estimate=pl.CostEstimate(
            flops=flops, transcendentals=0, bytes_accessed=bytes_accessed),
    )(x_in, w1p, b1p, w2p, b2p, w3p, b3p)

    # Strip batch / class padding added for lane-dense compute.
    return out_padded[:B, :num_classes]


def make_protein_classifier(params, *, batch_tile=1024):
    """Recommended path: pads/casts weights once and returns a jitted forward(x)."""
    prep = prepare_padded_params(params)
    num_classes = params["w3"].shape[1]
    fwd = jax.jit(functools.partial(_forward_impl,
                                    num_classes=num_classes, batch_tile=batch_tile))
    return lambda x: fwd(x, prep)


def protein_classifier_forward(x, params, *, batch_tile=1024):
    """One-shot convenience wrapper (prepares params per call; prefer
    make_protein_classifier for repeated inference)."""
    return _forward_impl(x, prepare_padded_params(params),
                         num_classes=params["w3"].shape[1], batch_tile=batch_tile)


def init_params(key, input_dim, num_classes):
    """Deterministic synthetic init matching nn.Linear shapes (stored as [in, out])."""
    k1, k2, k3, k4, k5, k6 = jax.random.split(key, 6)

    def lin(kw, kb, fan_in, fan_out):
        bound = 1.0 / jnp.sqrt(fan_in)
        w = jax.random.uniform(kw, (fan_in, fan_out), jnp.float32, -bound, bound)
        b = jax.random.uniform(kb, (1, fan_out), jnp.float32, -bound, bound)
        return w, b

    w1, b1 = lin(k1, k2, input_dim, 128)
    w2, b2 = lin(k3, k4, 128, 64)
    w3, b3 = lin(k5, k6, 64, num_classes)
    return {"w1": w1, "b1": b1, "w2": w2, "b2": b2, "w3": w3, "b3": b3}


if __name__ == "__main__":
    key = jax.random.PRNGKey(0)
    B, input_dim, num_classes = 8, 32, 4

    kx, kp = jax.random.split(key)
    x = jax.random.normal(kx, (B, input_dim), dtype=jnp.float32)
    params = init_params(kp, input_dim, num_classes)

    forward = make_protein_classifier(params)
    out = jax.block_until_ready(forward(x))
    assert out.shape == (B, num_classes)

    # Also exercise the one-shot wrapper once.
    out2 = jax.block_until_ready(protein_classifier_forward(x, params))
    assert jnp.allclose(out, out2)

    # Tight check: pure-JAX reference using the same bf16-input / f32-accum matmuls.
    xb = x.astype(jnp.bfloat16)
    w1b = params["w1"].astype(jnp.bfloat16)
    w2b = params["w2"].astype(jnp.bfloat16)
    w3b = params["w3"].astype(jnp.bfloat16)
    h1 = jnp.maximum(jnp.dot(xb, w1b, preferred_element_type=jnp.float32)
                     + params["b1"], 0.0)
    h2 = jnp.maximum(jnp.dot(h1.astype(jnp.bfloat16), w2b,
                             preferred_element_type=jnp.float32) + params["b2"], 0.0)
    ref_bf16 = jnp.dot(h2.astype(jnp.bfloat16), w3b,
                       preferred_element_type=jnp.float32) + params["b3"]
    assert jnp.allclose(out, ref_bf16, atol=2e-3, rtol=2e-3)

    # Loose check vs the full-f32 PyTorch-equivalent reference (eval-mode dropout = id).
    h1f = jnp.maximum(x @ params["w1"] + params["b1"], 0.0)
    h2f = jnp.maximum(h1f @ params["w2"] + params["b2"], 0.0)
    ref_f32 = h2f @ params["w3"] + params["b3"]
    assert jnp.allclose(out, ref_f32, atol=5e-2, rtol=5e-2)

    print("KERNEL_OK")
</pallas_src>

<mosaic_0001>
module attributes {stable_mosaic.version = 11 : i64} {
  func.func @_mlp_kernel(%arg0: i32, %arg1: memref<16x128xf32, #tpu.memory_space<vmem>>, %arg2: memref<128x128xbf16, #tpu.memory_space<vmem>>, %arg3: memref<1x128xf32, #tpu.memory_space<vmem>>, %arg4: memref<128x128xbf16, #tpu.memory_space<vmem>>, %arg5: memref<1x128xf32, #tpu.memory_space<vmem>>, %arg6: memref<128x128xbf16, #tpu.memory_space<vmem>>, %arg7: memref<1x128xf32, #tpu.memory_space<vmem>>, %arg8: memref<16x128xf32, #tpu.memory_space<vmem>>) attributes {dimension_semantics = [#tpu.dimension_semantics<parallel>], iteration_bounds = array<i64: 1>, scalar_prefetch = 0 : i64, scratch_operands = 0 : i64, tpu.core_type = #tpu.core_type<tc>, window_params = [{transform_indices = @transform_0, window_bounds = array<i64: 16, 128>}, {pipeline_mode = #tpu.pipeline_mode<synchronous>, transform_indices = @transform_1, window_bounds = array<i64: 128, 128>}, {pipeline_mode = #tpu.pipeline_mode<synchronous>, transform_indices = @transform_2, window_bounds = array<i64: 1, 128>}, {pipeline_mode = #tpu.pipeline_mode<synchronous>, transform_indices = @transform_3, window_bounds = array<i64: 128, 128>}, {pipeline_mode = #tpu.pipeline_mode<synchronous>, transform_indices = @transform_4, window_bounds = array<i64: 1, 128>}, {pipeline_mode = #tpu.pipeline_mode<synchronous>, transform_indices = @transform_5, window_bounds = array<i64: 128, 128>}, {pipeline_mode = #tpu.pipeline_mode<synchronous>, transform_indices = @transform_6, window_bounds = array<i64: 1, 128>}, {transform_indices = @transform_7, window_bounds = array<i64: 16, 128>}]} {
    %c0 = arith.constant 0 : index
    %c0_0 = arith.constant 0 : index
    %0 = vector.load %arg1[%c0, %c0_0] : memref<16x128xf32, #tpu.memory_space<vmem>>, vector<16x128xf32>
    %1 = arith.truncf %0 : vector<16x128xf32> to vector<16x128xbf16>
    %c0_1 = arith.constant 0 : index
    %c0_2 = arith.constant 0 : index
    %2 = vector.load %arg2[%c0_1, %c0_2] : memref<128x128xbf16, #tpu.memory_space<vmem>>, vector<128x128xbf16>
    %cst = arith.constant dense<0.000000e+00> : vector<16x128xf32>
    %3 = tpu.matmul %1, %2, %cst {dimension_numbers = #tpu.dot_dimension_numbers<[1], [0], [0], [1], [0, 0, 1, 1], [], []>} : vector<16x128xbf16>, vector<128x128xbf16>, vector<16x128xf32> -> vector<16x128xf32>
    %c0_3 = arith.constant 0 : index
    %c0_4 = arith.constant 0 : index
    %4 = vector.load %arg3[%c0_3, %c0_4] : memref<1x128xf32, #tpu.memory_space<vmem>>, vector<1x128xf32>
    %5 = vector.broadcast %4 : vector<1x128xf32> to vector<16x128xf32>
    %6 = arith.addf %3, %5 : vector<16x128xf32>
    %cst_5 = arith.constant 0.000000e+00 : f32
    %7 = vector.broadcast %cst_5 : f32 to vector<16x128xf32>
    %8 = arith.maximumf %6, %7 : vector<16x128xf32>
    %9 = arith.truncf %8 : vector<16x128xf32> to vector<16x128xbf16>
    %c0_6 = arith.constant 0 : index
    %c0_7 = arith.constant 0 : index
    %10 = vector.load %arg4[%c0_6, %c0_7] : memref<128x128xbf16, #tpu.memory_space<vmem>>, vector<128x128xbf16>
    %cst_8 = arith.constant dense<0.000000e+00> : vector<16x128xf32>
    %11 = tpu.matmul %9, %10, %cst_8 {dimension_numbers = #tpu.dot_dimension_numbers<[1], [0], [0], [1], [0, 0, 1, 1], [], []>} : vector<16x128xbf16>, vector<128x128xbf16>, vector<16x128xf32> -> vector<16x128xf32>
    %c0_9 = arith.constant 0 : index
    %c0_10 = arith.constant 0 : index
    %12 = vector.load %arg5[%c0_9, %c0_10] : memref<1x128xf32, #tpu.memory_space<vmem>>, vector<1x128xf32>
    %13 = vector.broadcast %12 : vector<1x128xf32> to vector<16x128xf32>
    %14 = arith.addf %11, %13 : vector<16x128xf32>
    %cst_11 = arith.constant 0.000000e+00 : f32
    %15 = vector.broadcast %cst_11 : f32 to vector<16x128xf32>
    %16 = arith.maximumf %14, %15 : vector<16x128xf32>
    %17 = arith.truncf %16 : vector<16x128xf32> to vector<16x128xbf16>
    %c0_12 = arith.constant 0 : index
    %c0_13 = arith.constant 0 : index
    %18 = vector.load %arg6[%c0_12, %c0_13] : memref<128x128xbf16, #tpu.memory_space<vmem>>, vector<128x128xbf16>
    %cst_14 = arith.constant dense<0.000000e+00> : vector<16x128xf32>
    %19 = tpu.matmul %17, %18, %cst_14 {dimension_numbers = #tpu.dot_dimension_numbers<[1], [0], [0], [1], [0, 0, 1, 1], [], []>} : vector<16x128xbf16>, vector<128x128xbf16>, vector<16x128xf32> -> vector<16x128xf32>
    %c0_15 = arith.constant 0 : index
    %c0_16 = arith.constant 0 : index
    %20 = vector.load %arg7[%c0_15, %c0_16] : memref<1x128xf32, #tpu.memory_space<vmem>>, vector<1x128xf32>
    %21 = vector.broadcast %20 : vector<1x128xf32> to vector<16x128xf32>
    %22 = arith.addf %19, %21 : vector<16x128xf32>
    %c0_17 = arith.constant 0 : index
    %c0_18 = arith.constant 0 : index
    %23 = vector.load %arg8[%c0_17, %c0_18] : memref<16x128xf32, #tpu.memory_space<vmem>>, vector<16x128xf32>
    tpu.vector_store %arg8[%c0_17, %c0_18], %22 {strides = array<i32>} : memref<16x128xf32, #tpu.memory_space<vmem>>, vector<16x128xf32>,
    return
  }
  func.func @transform_0(%arg0: i32) -> (i32, i32) {
    %c0_i32 = arith.constant 0 : i32
    %c0_i32_0 = arith.constant 0 : i32
    return %arg0, %c0_i32 : i32, i32
  }
  func.func @transform_1(%arg0: i32) -> (i32, i32) {
    %c0_i32 = arith.constant 0 : i32
    %c0_i32_0 = arith.constant 0 : i32
    %c0_i32_1 = arith.constant 0 : i32
    return %c0_i32, %c0_i32_0 : i32, i32
  }
  func.func @transform_2(%arg0: i32) -> (i32, i32) {
    %c0_i32 = arith.constant 0 : i32
    %c0_i32_0 = arith.constant 0 : i32
    %c0_i32_1 = arith.constant 0 : i32
    return %c0_i32, %c0_i32_0 : i32, i32
  }
  func.func @transform_3(%arg0: i32) -> (i32, i32) {
    %c0_i32 = arith.constant 0 : i32
    %c0_i32_0 = arith.constant 0 : i32
    %c0_i32_1 = arith.constant 0 : i32
    return %c0_i32, %c0_i32_0 : i32, i32
  }
  func.func @transform_4(%arg0: i32) -> (i32, i32) {
    %c0_i32 = arith.constant 0 : i32
    %c0_i32_0 = arith.constant 0 : i32
    %c0_i32_1 = arith.constant 0 : i32
    return %c0_i32, %c0_i32_0 : i32, i32
  }
  func.func @transform_5(%arg0: i32) -> (i32, i32) {
    %c0_i32 = arith.constant 0 : i32
    %c0_i32_0 = arith.constant 0 : i32
    %c0_i32_1 = arith.constant 0 : i32
    return %c0_i32, %c0_i32_0 : i32, i32
  }
  func.func @transform_6(%arg0: i32) -> (i32, i32) {
    %c0_i32 = arith.constant 0 : i32
    %c0_i32_0 = arith.constant 0 : i32
    %c0_i32_1 = arith.constant 0 : i32
    return %c0_i32, %c0_i32_0 : i32, i32
  }
  func.func @transform_7(%arg0: i32) -> (i32, i32) {
    %c0_i32 = arith.constant 0 : i32
    %c0_i32_0 = arith.constant 0 : i32
    return %arg0, %c0_i32 : i32, i32
  }
}

</mosaic_0001>

<llo_original>
// kernel: _forward_impl.1
$region0: #{_forward_impl.1}
  #allocation0 [shape = 'u32[]', space=smem, size = 0x4, offset = 0x4, fixed_abs, tag = 'smem constant byte address 0x4 - core index']
  #allocation1 [shape = 'u32[72,128]{1,0:T(1,128)}', space=vmem, size = 0x9000, scoped, tag = 'internal scratch']
  %s0 = inlined_call_operand.vmem [shape: f32[16,128], index: 0, kind: input, shape index: {}]
  %s1 = inlined_call_operand.hbm [shape: bf16[128,128], index: 1, kind: input, shape index: {}]
  %s2 = inlined_call_operand.vmem [shape: f32[1,128], index: 2, kind: input, shape index: {}]
  %s3 = inlined_call_operand.hbm [shape: bf16[128,128], index: 3, kind: input, shape index: {}]
  %s4 = inlined_call_operand.vmem [shape: f32[1,128], index: 4, kind: input, shape index: {}]
  %s5 = inlined_call_operand.hbm [shape: bf16[128,128], index: 5, kind: input, shape index: {}]
  %s6 = inlined_call_operand.vmem [shape: f32[1,128], index: 6, kind: input, shape index: {}]
  %s7 = inlined_call_operand.vmem [shape: f32[16,128], index: 7, kind: output, shape index: {}]
  %s8 = sld [smem:[#allocation0]]
  $region50: #{_forward_impl.1} parent=0
    _
  %s10 = ssub.s32 1, %s8
  %s11 = scalar_select 0, %s10, %s8
  $region1: #{_forward_impl.1} parent=0
    #allocation2 [shape = 'u8[32768]{0}', space=vmem, size = 0x8000, scoped, tag = 'input window, operand 1, single buffered']
    #allocation3 [shape = 's32[1]{0}', space=sflag, size = 0x4, scoped, tag = 'scoped memory for _forward_impl.1']
    #allocation4 [shape = 'u8[32768]{0}', space=vmem, size = 0x8000, scoped, tag = 'input window, operand 3, single buffered']
    #allocation5 [shape = 's32[1]{0}', space=sflag, size = 0x4, scoped, tag = 'scoped memory for _forward_impl.1']
    #allocation6 [shape = 'u8[32768]{0}', space=vmem, size = 0x8000, scoped, tag = 'input window, operand 5, single buffered']
    %12 = vsyncpa [#allocation3], 0
    %13 = vsyncpa [#allocation5], 0
    // Predicated region
    $region2: #{_forward_impl.1} parent=1 // pred_check
      _
    $region3: #{_forward_impl.1} parent=1 // pred_check_branch
      %15 = sbr.rel (0) target = $region5
    $region4: #{_forward_impl.1} parent=1 // pred_region
      _
    $region5: #{_forward_impl.1} parent=1 // pred_fallthru
      _
    // Predicated region
    $region6: #{_forward_impl.1} parent=1 // pred_check
      _
    $region7: #{_forward_impl.1} parent=1 // pred_check_branch
      %17 = sbr.rel (0) target = $region9
    $region8: #{_forward_impl.1} parent=1 // pred_region
      %19 = vsyncadd [#allocation3], 0
      %s20 = sshll.u32 %s1, 4
      %s21 = int_to_ptr.hbm [resolvable:$true] %s20
      %s22 = sshll.u32 [#allocation2], 4
      %s23 = int_to_ptr.vmem [resolvable:$true] %s22
      %28 = dma.hbm_to_vmem [thread:$0]  %s21, 1024, %s23, [#allocation3], 64, 64, 4
    $region9: #{_forward_impl.1} parent=1 // pred_fallthru
      _
    // Predicated region
    $region10: #{_forward_impl.1} parent=1 // pred_check
      _
    $region11: #{_forward_impl.1} parent=1 // pred_check_branch
      %30 = sbr.rel (0) target = $region13
    $region12: #{_forward_impl.1} parent=1 // pred_region
      _
    $region13: #{_forward_impl.1} parent=1 // pred_fallthru
      _
    // Predicated region
    $region14: #{_forward_impl.1} parent=1 // pred_check
      _
    $region15: #{_forward_impl.1} parent=1 // pred_check_branch
      %32 = sbr.rel (0) target = $region17
    $region16: #{_forward_impl.1} parent=1 // pred_region
      %34 = vsyncadd [#allocation5], 0
      %s35 = sshll.u32 %s3, 4
      %s36 = int_to_ptr.hbm [resolvable:$true] %s35
      %s37 = sshll.u32 [#allocation4], 4
      %s38 = int_to_ptr.vmem [resolvable:$true] %s37
      %43 = dma.hbm_to_vmem [thread:$0]  %s36, 1024, %s38, [#allocation5], 64, 64, 4
    $region17: #{_forward_impl.1} parent=1 // pred_fallthru
      _
    // Predicated region
    $region18: #{_forward_impl.1} parent=1 // pred_check
      _
    $region19: #{_forward_impl.1} parent=1 // pred_check_branch
      %45 = sbr.rel (0) target = $region21
    $region20: #{_forward_impl.1} parent=1 // pred_region
      _
    $region21: #{_forward_impl.1} parent=1 // pred_fallthru
      _
    // Predicated region
    $region22: #{_forward_impl.1} parent=1 // pred_check
      _
    $region23: #{_forward_impl.1} parent=1 // pred_check_branch
      %47 = sbr.rel (0) target = $region25
    $region24: #{_forward_impl.1} parent=1 // pred_region
      %49 = vsyncadd [#allocation5], 0
      %s50 = sshll.u32 %s5, 4
      %s51 = int_to_ptr.hbm [resolvable:$true] %s50
      %s52 = sshll.u32 [#allocation6], 4
      %s53 = int_to_ptr.vmem [resolvable:$true] %s52
      %58 = dma.hbm_to_vmem [thread:$0]  %s51, 1024, %s53, [#allocation5], 64, 64, 4
    $region25: #{_forward_impl.1} parent=1 // pred_fallthru
      _
    // Predicated region
    $region26: #{_forward_impl.1} parent=1 // pred_check
      _
    $region27: #{_forward_impl.1} parent=1 // pred_check_branch
      %60 = sbr.rel (0) target = $region29
    $region28: #{_forward_impl.1} parent=1 // pred_region
      _
    $region29: #{_forward_impl.1} parent=1 // pred_fallthru
      _
    // Predicated region
    $region30: #{_forward_impl.1} parent=1 // pred_check
      _
    $region31: #{_forward_impl.1} parent=1 // pred_check_branch
      %62 = sbr.rel (0) target = $region33
    $region32: #{_forward_impl.1} parent=1 // pred_region
      %64 = dma.done [#allocation3], 1024
    $region33: #{_forward_impl.1} parent=1 // pred_fallthru
      _
    // Predicated region
    $region34: #{_forward_impl.1} parent=1 // pred_check
      _
    $region35: #{_forward_impl.1} parent=1 // pred_check_branch
      %66 = sbr.rel (0) target = $region37
    $region36: #{_forward_impl.1} parent=1 // pred_region
      %68 = dma.done [#allocation5], 1024
    $region37: #{_forward_impl.1} parent=1 // pred_fallthru
      _
    // Predicated region
    $region38: #{_forward_impl.1} parent=1 // pred_check
      _
    $region39: #{_forward_impl.1} parent=1 // pred_check_branch
      %70 = sbr.rel (0) target = $region41
    $region40: #{_forward_impl.1} parent=1 // pred_region
      %72 = dma.done [#allocation5], 1024
    $region41: #{_forward_impl.1} parent=1 // pred_fallthru
      _
    %v73 = vld [vmem:[%s0] sm:$0xff]
    %v74 = vld [vmem:[%s0 + $0x8] sm:$0xff]
    %v75 = vpack.c.bf16 %v74, %v73
    %v76 = vld [vmem:[#allocation2] sm:$0xf]
    %v77 = vld [vmem:[#allocation2 + $0x4] sm:$0xf]
    %v78 = vld [vmem:[#allocation2 + $0x8] sm:$0xf]
    %v79 = vld [vmem:[#allocation2 + $0xc] sm:$0xf]
    %v80 = vld [vmem:[#allocation2 + $0x10] sm:$0xf]
    %v81 = vld [vmem:[#allocation2 + $0x14] sm:$0xf]
    %v82 = vld [vmem:[#allocation2 + $0x18] sm:$0xf]
    %v83 = vld [vmem:[#allocation2 + $0x1c] sm:$0xf]
    %v84 = vld [vmem:[#allocation2 + $0x20] sm:$0xf]
    %v85 = vld [vmem:[#allocation2 + $0x24] sm:$0xf]
    %v86 = vld [vmem:[#allocation2 + $0x28] sm:$0xf]
    %v87 = vld [vmem:[#allocation2 + $0x2c] sm:$0xf]
    %v88 = vld [vmem:[#allocation2 + $0x30] sm:$0xf]
    %v89 = vld [vmem:[#allocation2 + $0x34] sm:$0xf]
    %v90 = vld [vmem:[#allocation2 + $0x38] sm:$0xf]
    %v91 = vld [vmem:[#allocation2 + $0x3c] sm:$0xf]
    %v92 = vld [vmem:[%s2] sm:$0x1]
    %v94 = vperm.slane %v92, 0
    %v112 = vunpack.c.l.b16 %v76
    %v113 = vunpack.c.l.b16 %v77
    %v114 = vunpack.c.l.b16 %v78
    %v115 = vunpack.c.l.b16 %v79
    %v116 = vunpack.c.l.b16 %v80
    %v117 = vunpack.c.l.b16 %v81
    %v118 = vunpack.c.l.b16 %v82
    %v119 = vunpack.c.l.b16 %v83
    %v120 = vunpack.c.l.b16 %v84
    %v121 = vunpack.c.l.b16 %v85
    %v122 = vunpack.c.l.b16 %v86
    %v123 = vunpack.c.l.b16 %v87
    %v124 = vunpack.c.l.b16 %v88
    %v125 = vunpack.c.l.b16 %v89
    %v126 = vunpack.c.l.b16 %v90
    %v127 = vunpack.c.l.b16 %v91
    %v128 = vpack.c.b16 %v113, %v112
    %v129 = vpack.c.b16 %v115, %v114
    %v130 = vpack.c.b16 %v117, %v116
    %v131 = vpack.c.b16 %v119, %v118
    %v132 = vpack.c.b16 %v121, %v120
    %v133 = vpack.c.b16 %v123, %v122
    %v134 = vpack.c.b16 %v125, %v124
    %v135 = vpack.c.b16 %v127, %v126
    %144 = vmatpush.bf16.msra.mxu0 %v135
    %145 = vmatpush.bf16.msra.mxu0 %v134
    %146 = vmatpush.bf16.msra.mxu0 %v133
    %147 = vmatpush.bf16.msra.mxu0 %v132
    %148 = vmatpush.bf16.msra.mxu0 %v131
    %149 = vmatpush.bf16.msra.mxu0 %v130
    %150 = vmatpush.bf16.msra.mxu0 %v129
    %151 = vmatpush.bf16.msra.mxu0 %v128
    %152 = vmatmul.bf16.gmra.mxu0 %v75
    %v153 = vpop.f32.mrf.mxu0
    %v154 = vadd.f32 %v94, %v153
    %v155 = vpop.f32.mrf.mxu0
    %v156 = vadd.f32 %v94, %v155
    %157 = vdwg.mxu0
    %v158 = vmax.f32 %v154, 0.0
    %v159 = vmax.f32 %v156, 0.0
    %v160 = vpack.c.bf16 %v159, %v158
    %v161 = vld [vmem:[#allocation4] sm:$0xf]
    %v162 = vld [vmem:[#allocation4 + $0x4] sm:$0xf]
    %v163 = vld [vmem:[#allocation4 + $0x8] sm:$0xf]
    %v164 = vld [vmem:[#allocation4 + $0xc] sm:$0xf]
    %v165 = vld [vmem:[#allocation4 + $0x10] sm:$0xf]
    %v166 = vld [vmem:[#allocation4 + $0x14] sm:$0xf]
    %v167 = vld [vmem:[#allocation4 + $0x18] sm:$0xf]
    %v168 = vld [vmem:[#allocation4 + $0x1c] sm:$0xf]
    %v169 = vld [vmem:[#allocation4 + $0x20] sm:$0xf]
    %v170 = vld [vmem:[#allocation4 + $0x24] sm:$0xf]
    %v171 = vld [vmem:[#allocation4 + $0x28] sm:$0xf]
    %v172 = vld [vmem:[#allocation4 + $0x2c] sm:$0xf]
    %v173 = vld [vmem:[#allocation4 + $0x30] sm:$0xf]
    %v174 = vld [vmem:[#allocation4 + $0x34] sm:$0xf]
    %v175 = vld [vmem:[#allocation4 + $0x38] sm:$0xf]
    %v176 = vld [vmem:[#allocation4 + $0x3c] sm:$0xf]
    %v177 = vld [vmem:[%s4] sm:$0x1]
    %v179 = vperm.slane %v177, 0
    %v197 = vunpack.c.l.b16 %v161
    %v198 = vunpack.c.l.b16 %v162
    %v199 = vunpack.c.l.b16 %v163
    %v200 = vunpack.c.l.b16 %v164
    %v201 = vunpack.c.l.b16 %v165
    %v202 = vunpack.c.l.b16 %v166
    %v203 = vunpack.c.l.b16 %v167
    %v204 = vunpack.c.l.b16 %v168
    %v205 = vunpack.c.l.b16 %v169
    %v206 = vunpack.c.l.b16 %v170
    %v207 = vunpack.c.l.b16 %v171
    %v208 = vunpack.c.l.b16 %v172
    %v209 = vunpack.c.l.b16 %v173
    %v210 = vunpack.c.l.b16 %v174
    %v211 = vunpack.c.l.b16 %v175
    %v212 = vunpack.c.l.b16 %v176
    %v213 = vpack.c.b16 %v198, %v197
    %v214 = vpack.c.b16 %v200, %v199
    %v215 = vpack.c.b16 %v202, %v201
    %v216 = vpack.c.b16 %v204, %v203
    %v217 = vpack.c.b16 %v206, %v205
    %v218 = vpack.c.b16 %v208, %v207
    %v219 = vpack.c.b16 %v210, %v209
    %v220 = vpack.c.b16 %v212, %v211
    %229 = vmatpush.bf16.msra.mxu0 %v220
    %230 = vmatpush.bf16.msra.mxu0 %v219
    %231 = vmatpush.bf16.msra.mxu0 %v218
    %232 = vmatpush.bf16.msra.mxu0 %v217
    %233 = vmatpush.bf16.msra.mxu0 %v216
    %234 = vmatpush.bf16.msra.mxu0 %v215
    %235 = vmatpush.bf16.msra.mxu0 %v214
    %236 = vmatpush.bf16.msra.mxu0 %v213
    %237 = vmatmul.bf16.gmra.mxu0 %v160
    %v238 = vpop.f32.mrf.mxu0
    %v239 = vadd.f32 %v179, %v238
    %v240 = vpop.f32.mrf.mxu0
    %v241 = vadd.f32 %v179, %v240
    %242 = vdwg.mxu0
    %v243 = vmax.f32 %v239, 0.0
    %v244 = vmax.f32 %v241, 0.0
    %v245 = vpack.c.bf16 %v244, %v243
    %v246 = vld [vmem:[#allocation6] sm:$0xf]
    %v247 = vld [vmem:[#allocation6 + $0x4] sm:$0xf]
    %v248 = vld [vmem:[#allocation6 + $0x8] sm:$0xf]
    %v249 = vld [vmem:[#allocation6 + $0xc] sm:$0xf]
    %v250 = vld [vmem:[#allocation6 + $0x10] sm:$0xf]
    %v251 = vld [vmem:[#allocation6 + $0x14] sm:$0xf]
    %v252 = vld [vmem:[#allocation6 + $0x18] sm:$0xf]
    %v253 = vld [vmem:[#allocation6 + $0x1c] sm:$0xf]
    %v254 = vld [vmem:[#allocation6 + $0x20] sm:$0xf]
    %v255 = vld [vmem:[#allocation6 + $0x24] sm:$0xf]
    %v256 = vld [vmem:[#allocation6 + $0x28] sm:$0xf]
    %v257 = vld [vmem:[#allocation6 + $0x2c] sm:$0xf]
    %v258 = vld [vmem:[#allocation6 + $0x30] sm:$0xf]
    %v259 = vld [vmem:[#allocation6 + $0x34] sm:$0xf]
    %v260 = vld [vmem:[#allocation6 + $0x38] sm:$0xf]
    %v261 = vld [vmem:[#allocation6 + $0x3c] sm:$0xf]
    %v262 = vld [vmem:[%s6] sm:$0x1]
    %v264 = vperm.slane %v262, 0
    %v282 = vunpack.c.l.b16 %v246
    %v283 = vunpack.c.l.b16 %v247
    %v284 = vunpack.c.l.b16 %v248
    %v285 = vunpack.c.l.b16 %v249
    %v286 = vunpack.c.l.b16 %v250
    %v287 = vunpack.c.l.b16 %v251
    %v288 = vunpack.c.l.b16 %v252
    %v289 = vunpack.c.l.b16 %v253
    %v290 = vunpack.c.l.b16 %v254
    %v291 = vunpack.c.l.b16 %v255
    %v292 = vunpack.c.l.b16 %v256
    %v293 = vunpack.c.l.b16 %v257
    %v294 = vunpack.c.l.b16 %v258
    %v295 = vunpack.c.l.b16 %v259
    %v296 = vunpack.c.l.b16 %v260
    %v297 = vunpack.c.l.b16 %v261
    %v298 = vpack.c.b16 %v283, %v282
    %v299 = vpack.c.b16 %v285, %v284
    %v300 = vpack.c.b16 %v287, %v286
    %v301 = vpack.c.b16 %v289, %v288
    %v302 = vpack.c.b16 %v291, %v290
    %v303 = vpack.c.b16 %v293, %v292
    %v304 = vpack.c.b16 %v295, %v294
    %v305 = vpack.c.b16 %v297, %v296
    %314 = vmatpush.bf16.msra.mxu0 %v305
    %315 = vmatpush.bf16.msra.mxu0 %v304
    %316 = vmatpush.bf16.msra.mxu0 %v303
    %317 = vmatpush.bf16.msra.mxu0 %v302
    %318 = vmatpush.bf16.msra.mxu0 %v301
    %319 = vmatpush.bf16.msra.mxu0 %v300
    %320 = vmatpush.bf16.msra.mxu0 %v299
    %321 = vmatpush.bf16.msra.mxu0 %v298
    %322 = vmatmul.bf16.gmra.mxu0 %v245
    %v323 = vpop.f32.mrf.mxu0
    %v324 = vadd.f32 %v264, %v323
    %v325 = vpop.f32.mrf.mxu0
    %v326 = vadd.f32 %v264, %v325
    %327 = vdwg.mxu0
    %328 = vst [vmem:[%s7] sm:$0xff] %v324
    %329 = vst [vmem:[%s7 + $0x8] sm:$0xff] %v326
    // Predicated region
    $region42: #{_forward_impl.1} parent=1 // pred_check
      _
    $region43: #{_forward_impl.1} parent=1 // pred_check_branch
      %331 = sbr.rel (0) target = $region45
    $region44: #{_forward_impl.1} parent=1 // pred_region
      _
    $region45: #{_forward_impl.1} parent=1 // pred_fallthru
      _
    // Predicated region
    $region46: #{_forward_impl.1} parent=1 // pred_check
      _
    $region47: #{_forward_impl.1} parent=1 // pred_check_branch
      %333 = sbr.rel (0) target = $region49
    $region48: #{_forward_impl.1} parent=1 // pred_region
      _
    $region49: #{_forward_impl.1} parent=1 // pred_fallthru
      _
    %334 = vsyncpa [#allocation3], 1
    %335 = vsyncpa [#allocation5], 1

</llo_original>
